<compile_context>
chip_gen: v5e
topology: v5e:2x2
jax: 0.10.0
libtpu: 0.0.40
codegen_flags: <defaults>
</compile_context>

<pallas_src>
import jax
import jax.numpy as jnp
from jax.experimental import pallas as pl
from jax.experimental.pallas import tpu as pltpu

HIDDEN = 100  # nn.Linear(in_dim, 100)


def _round_up(x, m):
    return (x + m - 1) // m * m


def _collapsed_kernel(x_ref, w_ref, b_ref, o_ref):
    # One MXU matmul per batch tile; f32 accumulate; bias broadcast on the VPU.
    acc = jnp.dot(x_ref[...], w_ref[...], preferred_element_type=jnp.float32)
    o_ref[...] = (acc + b_ref[...]).astype(o_ref.dtype)


def _two_stage_kernel(x_ref, w1_ref, b1_ref, w2_ref, b2_ref, o_ref):
    # fc1 + head fused in one kernel; the (tm, 128) hidden never leaves VMEM/vregs.
    h = jnp.dot(x_ref[...], w1_ref[...], preferred_element_type=jnp.float32) + b1_ref[...]
    acc = jnp.dot(h.astype(w2_ref.dtype), w2_ref[...], preferred_element_type=jnp.float32)
    o_ref[...] = (acc + b2_ref[...]).astype(o_ref.dtype)


class LinearModelKernel:
    """Pallas-TPU forward of LinearModel:  (x @ w1 + b1) @ w2 + b2.

    Weight prep is done once at construction; __call__ is just the kernel launch.
    w1: [in_dim, 100], b1: [1, 100], w2: [100, out_dim], b2: [1, out_dim]
    (weights stored transposed relative to PyTorch's (out, in) layout).
    """

    # Collapsed W must stay comfortably resident in VMEM on every generation
    # (v7x has only 64 MiB physical); beyond this, keep the two-stage form.
    _COLLAPSED_W_BUDGET = 16 << 20

    def __init__(self, w1, b1, w2, b2, *, use_bf16=False, tm=512, collapse=None):
        in_dim, hidden = w1.shape
        out_dim = w2.shape[1]
        self.in_dim, self.hidden, self.out_dim = in_dim, hidden, out_dim
        self.use_bf16 = bool(use_bf16)
        self.op_dtype = jnp.bfloat16 if use_bf16 else jnp.float32
        self.out_dtype = jnp.float32
        # bf16 packs 16 rows per sublane group; keep tiles aligned accordingly and
        # round any user-supplied tm down to the alignment.
        self.row_align = 16 if use_bf16 else 8
        self.tm = max((int(tm) // self.row_align) * self.row_align, self.row_align)

        op_bytes = jnp.dtype(self.op_dtype).itemsize
        if collapse is None:
            flops_ok = in_dim * out_dim <= hidden * (in_dim + out_dim)
            vmem_ok = in_dim * out_dim * op_bytes <= self._COLLAPSED_W_BUDGET
            collapse = flops_ok and vmem_ok
        self.collapse = bool(collapse)

        f32 = jnp.float32
        if self.collapse:
            # Exact algebra (no nonlinearity between the two Linear layers):
            #   (x@W1 + b1)@W2 + b2 == x@(W1@W2) + (b1@W2 + b2)
            w = jnp.dot(w1.astype(f32), w2.astype(f32), preferred_element_type=f32)
            b = jnp.dot(b1.astype(f32), w2.astype(f32), preferred_element_type=f32) + b2
            self.params = (w.astype(self.op_dtype), b.astype(f32))
        else:
            # Zero-pad the hidden dim 100 -> 128 once (exact: padded hidden units
            # get bias 0 and zero rows in W2, contributing nothing).
            hpad = _round_up(hidden, 128)
            self.hpad = hpad
            w1p = jnp.pad(w1, ((0, 0), (0, hpad - hidden))).astype(self.op_dtype)
            b1p = jnp.pad(b1, ((0, 0), (0, hpad - hidden))).astype(f32)
            w2p = jnp.pad(w2, ((0, hpad - hidden), (0, 0))).astype(self.op_dtype)
            self.params = (w1p, b1p, w2p, b2.astype(f32))

        self._fwd = jax.jit(self._forward)

    def __call__(self, x):
        return self._fwd(x, *self.params)

    # ------------------------------------------------------------------ #

    def _tile_rows(self, B):
        # Aim for ~8 grid steps (DMA/compute overlap + v7x megacore), rounded to
        # the sublane packing, capped by the user tile size.
        tm = min(self.tm, max(_round_up(pl.cdiv(B, 8), self.row_align), self.row_align))
        if tm >= B:
            tm = B  # single full-extent block (always legal, no masking waste)
        return tm

    def _compiler_params(self, vmem_need_bytes):
        # v5e's scoped-VMEM default is ~16 MiB even though it has 128 MiB; raise
        # the limit, but stay below v7x's 64 MiB physical VMEM.
        limit = int(min(max(2 * vmem_need_bytes, 32 << 20), 60 << 20))
        # NOTE: on v7x, "parallel" duplicates the resident-W DMA into both TCs'
        # VMEM; acceptable here because W is small / amortized over batch tiles.
        return pltpu.CompilerParams(
            dimension_semantics=("parallel",),
            vmem_limit_bytes=limit,
        )

    def _forward(self, x, *params):
        B = x.shape[0]
        in_dim, out_dim = self.in_dim, self.out_dim
        if x.dtype != self.op_dtype:
            x = x.astype(self.op_dtype)

        tm = self._tile_rows(B)
        grid = (pl.cdiv(B, tm),)  # ragged last tile handled by Pallas (no batch pad)
        op_bytes = jnp.dtype(self.op_dtype).itemsize

        if self.collapse:
            w, b = params
            w_bytes = in_dim * out_dim * op_bytes + out_dim * 4
            vmem_need = 2 * tm * (in_dim * op_bytes + out_dim * 4) + 2 * w_bytes
            cost = pl.CostEstimate(
                flops=2 * B * in_dim * out_dim,
                transcendentals=0,
                bytes_accessed=B * in_dim * op_bytes + w_bytes + B * out_dim * 4,
            )
            return pl.pallas_call(
                _collapsed_kernel,
                out_shape=jax.ShapeDtypeStruct((B, out_dim), self.out_dtype),
                grid=grid,
                in_specs=[
                    pl.BlockSpec((tm, in_dim), lambda i: (i, 0)),       # x tile (pipelined)
                    pl.BlockSpec((in_dim, out_dim), lambda i: (0, 0)),  # W resident
                    pl.BlockSpec((1, out_dim), lambda i: (0, 0)),       # bias resident
                ],
                out_specs=pl.BlockSpec((tm, out_dim), lambda i: (i, 0)),
                compiler_params=self._compiler_params(vmem_need),
                cost_estimate=cost,
            )(x, w, b)

        w1p, b1p, w2p, b2 = params
        hpad = self.hpad
        w_bytes = (in_dim * hpad + hpad * out_dim) * op_bytes + (hpad + out_dim) * 4
        vmem_need = 2 * tm * (in_dim * op_bytes + out_dim * 4) + 2 * w_bytes
        cost = pl.CostEstimate(
            flops=2 * B * hpad * (in_dim + out_dim),
            transcendentals=0,
            bytes_accessed=B * in_dim * op_bytes + w_bytes + B * out_dim * 4,
        )
        return pl.pallas_call(
            _two_stage_kernel,
            out_shape=jax.ShapeDtypeStruct((B, out_dim), self.out_dtype),
            grid=grid,
            in_specs=[
                pl.BlockSpec((tm, in_dim), lambda i: (i, 0)),      # x tile (pipelined)
                pl.BlockSpec((in_dim, hpad), lambda i: (0, 0)),    # W1 resident
                pl.BlockSpec((1, hpad), lambda i: (0, 0)),         # b1 resident
                pl.BlockSpec((hpad, out_dim), lambda i: (0, 0)),   # W2 resident
                pl.BlockSpec((1, out_dim), lambda i: (0, 0)),      # b2 resident
            ],
            out_specs=pl.BlockSpec((tm, out_dim), lambda i: (i, 0)),
            compiler_params=self._compiler_params(vmem_need),
            cost_estimate=cost,
        )(x, w1p, b1p, w2p, b2)


def init_params(key, in_dim, out_dim, dtype=jnp.float32):
    """Deterministic init mirroring nn.Linear's U(-1/sqrt(fan_in), +1/sqrt(fan_in))."""
    k1, k2, k3, k4 = jax.random.split(key, 4)
    lim1 = 1.0 / jnp.sqrt(in_dim)
    lim2 = 1.0 / jnp.sqrt(HIDDEN)
    w1 = jax.random.uniform(k1, (in_dim, HIDDEN), dtype, -lim1, lim1)
    b1 = jax.random.uniform(k2, (1, HIDDEN), dtype, -lim1, lim1)
    w2 = jax.random.uniform(k3, (HIDDEN, out_dim), dtype, -lim2, lim2)
    b2 = jax.random.uniform(k4, (1, out_dim), dtype, -lim2, lim2)
    return w1, b1, w2, b2


if __name__ == "__main__":
    in_dim, out_dim, batch = 32, 8, 64
    key = jax.random.PRNGKey(0)
    kx, kp = jax.random.split(key)
    x = jax.random.normal(kx, (batch, in_dim), jnp.float32)
    w1, b1, w2, b2 = init_params(kp, in_dim, out_dim)
    ref = (x @ w1 + b1) @ w2 + b2

    # 1) default path: collapsed single-matmul kernel, f32 operands, multi-step grid.
    model = LinearModelKernel(w1, b1, w2, b2)
    out = jax.block_until_ready(model(x))
    assert out.shape == (batch, out_dim)
    assert jnp.allclose(out, ref, atol=1e-4, rtol=1e-4), "collapsed path mismatch"

    # 2) forced two-stage fused kernel (what wide in_dim/out_dim layers select), f32.
    model_ts = LinearModelKernel(w1, b1, w2, b2, collapse=False)
    out_ts = jax.block_until_ready(model_ts(x))
    assert jnp.allclose(out_ts, ref, atol=1e-4, rtol=1e-4), "two-stage path mismatch"

    # 3) bf16 MXU operands + ragged batch (not a multiple of 16); looser tolerance
    #    because bf16 operand rounding changes the numerics slightly.
    x_ragged = x[:37]
    model_bf16 = LinearModelKernel(w1, b1, w2, b2, use_bf16=True)
    out_bf16 = jax.block_until_ready(model_bf16(x_ragged))
    assert jnp.allclose(out_bf16, ref[:37], atol=5e-2, rtol=5e-2), "bf16 path mismatch"

    print("KERNEL_OK")
</pallas_src>

<mosaic_0001>
module attributes {stable_mosaic.version = 11 : i64} {
  func.func @_collapsed_kernel(%arg0: i32, %arg1: memref<8x32xf32, #tpu.memory_space<vmem>>, %arg2: memref<32x8xf32, #tpu.memory_space<vmem>>, %arg3: memref<1x8xf32, #tpu.memory_space<vmem>>, %arg4: memref<8x8xf32, #tpu.memory_space<vmem>>) attributes {dimension_semantics = [#tpu.dimension_semantics<parallel>], iteration_bounds = array<i64: 8>, scalar_prefetch = 0 : i64, scratch_operands = 0 : i64, tpu.core_type = #tpu.core_type<tc>, window_params = [{transform_indices = @transform_0, window_bounds = array<i64: 8, 32>}, {pipeline_mode = #tpu.pipeline_mode<synchronous>, transform_indices = @transform_1, window_bounds = array<i64: 32, 8>}, {pipeline_mode = #tpu.pipeline_mode<synchronous>, transform_indices = @transform_2, window_bounds = array<i64: 1, 8>}, {transform_indices = @transform_3, window_bounds = array<i64: 8, 8>}]} {
    %c0 = arith.constant 0 : index
    %c0_0 = arith.constant 0 : index
    %0 = vector.load %arg1[%c0, %c0_0] : memref<8x32xf32, #tpu.memory_space<vmem>>, vector<8x32xf32>
    %c0_1 = arith.constant 0 : index
    %c0_2 = arith.constant 0 : index
    %1 = vector.load %arg2[%c0_1, %c0_2] : memref<32x8xf32, #tpu.memory_space<vmem>>, vector<32x8xf32>
    %cst = arith.constant dense<0.000000e+00> : vector<8x8xf32>
    %2 = tpu.matmul %0, %1, %cst {dimension_numbers = #tpu.dot_dimension_numbers<[1], [0], [0], [1], [0, 0, 1, 1], [], []>} : vector<8x32xf32>, vector<32x8xf32>, vector<8x8xf32> -> vector<8x8xf32>
    %c0_3 = arith.constant 0 : index
    %c0_4 = arith.constant 0 : index
    %3 = vector.load %arg3[%c0_3, %c0_4] : memref<1x8xf32, #tpu.memory_space<vmem>>, vector<1x8xf32>
    %4 = vector.broadcast %3 : vector<1x8xf32> to vector<8x8xf32>
    %5 = arith.addf %2, %4 : vector<8x8xf32>
    %c0_5 = arith.constant 0 : index
    %c0_6 = arith.constant 0 : index
    %6 = vector.load %arg4[%c0_5, %c0_6] : memref<8x8xf32, #tpu.memory_space<vmem>>, vector<8x8xf32>
    tpu.vector_store %arg4[%c0_5, %c0_6], %5 {strides = array<i32>} : memref<8x8xf32, #tpu.memory_space<vmem>>, vector<8x8xf32>,
    return
  }
  func.func @transform_0(%arg0: i32) -> (i32, i32) {
    %c0_i32 = arith.constant 0 : i32
    %c0_i32_0 = arith.constant 0 : i32
    return %arg0, %c0_i32 : i32, i32
  }
  func.func @transform_1(%arg0: i32) -> (i32, i32) {
    %c0_i32 = arith.constant 0 : i32
    %c0_i32_0 = arith.constant 0 : i32
    %c0_i32_1 = arith.constant 0 : i32
    return %c0_i32, %c0_i32_0 : i32, i32
  }
  func.func @transform_2(%arg0: i32) -> (i32, i32) {
    %c0_i32 = arith.constant 0 : i32
    %c0_i32_0 = arith.constant 0 : i32
    %c0_i32_1 = arith.constant 0 : i32
    return %c0_i32, %c0_i32_0 : i32, i32
  }
  func.func @transform_3(%arg0: i32) -> (i32, i32) {
    %c0_i32 = arith.constant 0 : i32
    %c0_i32_0 = arith.constant 0 : i32
    return %arg0, %c0_i32 : i32, i32
  }
}

</mosaic_0001>

<llo_original>
// kernel: _forward.1
$region0: #{_forward.1}
  #allocation0 [shape = 'u32[]', space=smem, size = 0x4, offset = 0x4, fixed_abs, tag = 'smem constant byte address 0x4 - core index']
  #allocation1 [shape = 'u32[72,128]{1,0:T(1,128)}', space=vmem, size = 0x9000, scoped, tag = 'internal scratch']
  %s0 = inlined_call_operand.vmem [shape: f32[64,32], index: 0, kind: input, shape index: {}]
  %s1 = inlined_call_operand.vmem [shape: f32[32,8], index: 1, kind: input, shape index: {}]
  %s2 = inlined_call_operand.vmem [shape: f32[1,8], index: 2, kind: input, shape index: {}]
  %s3 = inlined_call_operand.vmem [shape: f32[64,8], index: 3, kind: output, shape index: {}]
  %s4 = sld [smem:[#allocation0]]
  $region45: #{_forward.1} parent=0
    _
  %s6 = ssub.s32 1, %s4
  %s7 = scalar_select 0, %s6, %s4
  loop: start=0, step=1, limit=10
  $region2: #{_forward.1} parent=0 // loop_pre_header
    _
  $region3: #{_forward.1} parent=0 // loop_header
    %s9 = sphi 0, %s13
    %p10 = scmp.ge.s32.totalorder %s9, 10
    %s19 = sphi 0, %s21
    %s22 = sphi 0, %s19
    %s23 = sphi 0, %s22
    %s39 = sphi 0, %s23
    %s43 = sphi 0, %s43
    %s45 = sphi 0, %s43
    %s46 = sphi 0, %s45
    %s60 = sphi 0, %s46
    %s64 = sphi 0, %s64
    %s66 = sphi 0, %s64
    %s67 = sphi 0, %s66
    %s81 = sphi 0, %s67
    %s87 = sphi 0, %s89
    %s90 = sphi 0, %s87
    %s91 = sphi 0, %s90
    %s107 = sphi 0, %s91
  $region4: #{_forward.1} parent=0 // loop_header_branch
    %12 = sbr.rel (%p10) target = $region8
  $region5: #{_forward.1} parent=0 // loop_body
    %s14 = ssub.s32 %s9, 1
    %s15 = ssub.s32 %s9, 2
    %s16 = sadd.s32 %s9, 1
    %s17 = ssub.s32 %s9, %s16
    %p18 = scmp.eq.s32.totalorder %s17, 0
    %s20 = sadd.s32 %s19, 1
    %s21 = scalar_select %p18, %s19, %s20
    %p24 = pneg %p18
    %p25 = scmp.eq.s32.totalorder %s9, 7
    %p26 = por %p24, %p25
    %p27 = scmp.ne.s32.totalorder %s19, %s22
    %p28 = scmp.eq.s32.totalorder %s9, 0
    %p29 = por %p27, %p28
    %p30 = scmp.ne.s32.totalorder %s19, %s22
    %p31 = scmp.eq.s32.totalorder %s14, 7
    %p32 = por %p30, %p31
    %p33 = scmp.ne.s32.totalorder %s22, %s23
    %p34 = scmp.eq.s32.totalorder %s14, 0
    %p35 = por %p33, %p34
    %p36 = scmp.ne.s32.totalorder %s22, %s23
    %p37 = scmp.eq.s32.totalorder %s15, 7
    %p38 = por %p36, %p37
    %p40 = scmp.ne.s32.totalorder %s23, %s39
    %p41 = scmp.eq.s32.totalorder %s15, 0
    %p42 = por %p40, %p41
    %s44 = sadd.s32 %s43, 1
    %p47 = scmp.eq.s32.totalorder %s9, 7
    %p48 = scmp.ne.s32.totalorder %s43, %s45
    %p49 = scmp.eq.s32.totalorder %s9, 0
    %p50 = por %p48, %p49
    %p51 = scmp.ne.s32.totalorder %s43, %s45
    %p52 = scmp.eq.s32.totalorder %s14, 7
    %p53 = por %p51, %p52
    %p54 = scmp.ne.s32.totalorder %s45, %s46
    %p55 = scmp.eq.s32.totalorder %s14, 0
    %p56 = por %p54, %p55
    %p57 = scmp.ne.s32.totalorder %s45, %s46
    %p58 = scmp.eq.s32.totalorder %s15, 7
    %p59 = por %p57, %p58
    %p61 = scmp.ne.s32.totalorder %s46, %s60
    %p62 = scmp.eq.s32.totalorder %s15, 0
    %p63 = por %p61, %p62
    %s65 = sadd.s32 %s64, 1
    %p68 = scmp.eq.s32.totalorder %s9, 7
    %p69 = scmp.ne.s32.totalorder %s64, %s66
    %p70 = scmp.eq.s32.totalorder %s9, 0
    %p71 = por %p69, %p70
    %p72 = scmp.ne.s32.totalorder %s64, %s66
    %p73 = scmp.eq.s32.totalorder %s14, 7
    %p74 = por %p72, %p73
    %p75 = scmp.ne.s32.totalorder %s66, %s67
    %p76 = scmp.eq.s32.totalorder %s14, 0
    %p77 = por %p75, %p76
    %p78 = scmp.ne.s32.totalorder %s66, %s67
    %p79 = scmp.eq.s32.totalorder %s15, 7
    %p80 = por %p78, %p79
    %p82 = scmp.ne.s32.totalorder %s67, %s81
    %p83 = scmp.eq.s32.totalorder %s15, 0
    %p84 = por %p82, %p83
    %s85 = ssub.s32 %s9, %s16
    %p86 = scmp.eq.s32.totalorder %s85, 0
    %s88 = sadd.s32 %s87, 1
    %s89 = scalar_select %p86, %s87, %s88
    %p92 = pneg %p86
    %p93 = scmp.eq.s32.totalorder %s9, 7
    %p94 = por %p92, %p93
    %p95 = scmp.ne.s32.totalorder %s87, %s90
    %p96 = scmp.eq.s32.totalorder %s9, 0
    %p97 = por %p95, %p96
    %p98 = scmp.ne.s32.totalorder %s87, %s90
    %p99 = scmp.eq.s32.totalorder %s14, 7
    %p100 = por %p98, %p99
    %p101 = scmp.ne.s32.totalorder %s90, %s91
    %p102 = scmp.eq.s32.totalorder %s14, 0
    %p103 = por %p101, %p102
    %p104 = scmp.ne.s32.totalorder %s90, %s91
    %p105 = scmp.eq.s32.totalorder %s15, 7
    %p106 = por %p104, %p105
    %p108 = scmp.ne.s32.totalorder %s91, %s107
    %p109 = scmp.eq.s32.totalorder %s15, 0
    %p110 = por %p108, %p109
    %p111 = scmp.le.s32.totalorder 1, %s9
    %p112 = scmp.lt.s32.totalorder %s9, 9
    %p113 = pnand %p111, %p112
    %p114 = pneg %p113
    // Predicated region
    $region9: #{_forward.1} parent=5 // pred_check
      _
    $region10: #{_forward.1} parent=5 // pred_check_branch
      %116 = sbr.rel (%p113) target = $region12
    $region11: #{_forward.1} parent=5 // pred_region
      %s117 = ssub.s32 %s9, 1
      // Predicated region
      $region13: #{_forward.1} parent=11 // pred_check
        %p118 = pneg %p56
      $region14: #{_forward.1} parent=11 // pred_check_branch
        %120 = sbr.rel (%p118) target = $region16
      $region15: #{_forward.1} parent=11 // pred_region
        _
      $region16: #{_forward.1} parent=11 // pred_fallthru
        _
      // Predicated region
      $region17: #{_forward.1} parent=11 // pred_check
        %p121 = pneg %p77
      $region18: #{_forward.1} parent=11 // pred_check_branch
        %123 = sbr.rel (%p121) target = $region20
      $region19: #{_forward.1} parent=11 // pred_region
        _
      $region20: #{_forward.1} parent=11 // pred_fallthru
        _
    $region12: #{_forward.1} parent=5 // pred_fallthru
      _
    %p124 = scmp.lt.s32.totalorder %s9, 8
    // Predicated region
    $region21: #{_forward.1} parent=5 // pred_check
      %p125 = pneg %p124
    $region22: #{_forward.1} parent=5 // pred_check_branch
      %127 = sbr.rel (%p125) target = $region24
    $region23: #{_forward.1} parent=5 // pred_region
      // Predicated region
      $region25: #{_forward.1} parent=23 // pred_check
        %p128 = pneg %p29
      $region26: #{_forward.1} parent=23 // pred_check_branch
        %130 = sbr.rel (%p128) target = $region28
      $region27: #{_forward.1} parent=23 // pred_region
        %p131 = scmp.lt.s32.totalorder %s9, 7
        %s132 = scalar_select %p131, %s9, 7
        %s133 = smul.addr %s132, 8
        %s134 = scalar_lea.vmem %s0, %s133
      $region28: #{_forward.1} parent=23 // pred_fallthru
        _
    $region24: #{_forward.1} parent=5 // pred_fallthru
      _
    %p135 = scmp.le.s32.totalorder 1, %s9
    %p136 = scmp.lt.s32.totalorder %s9, 9
    %p137 = pnand %p135, %p136
    %p138 = pneg %p137
    // Predicated region
    $region29: #{_forward.1} parent=5 // pred_check
      _
    $region30: #{_forward.1} parent=5 // pred_check_branch
      %140 = sbr.rel (%p137) target = $region32
    $region31: #{_forward.1} parent=5 // pred_region
      %s141 = ssub.s32 %s9, 1
      %p142 = scmp.lt.s32.totalorder %s14, 7
      %s143 = scalar_select %p142, %s14, 7
      %s144 = smul.addr %s143, 8
      %s145 = scalar_lea.vmem %s0, %s144
      %p146 = pneg %p35
      %p147 = pneg %p32
      %p148 = pneg %p56
      %p149 = pneg %p53
      %p150 = pneg %p77
      %p151 = pneg %p74
      %p152 = pneg %p103
      %p153 = pneg %p100
      %p154 = scmp.lt.s32.totalorder %s14, 7
      %s155 = scalar_select %p154, %s14, 7
      %s156 = smul.addr %s155, 8
      %s157 = scalar_lea.vmem %s3, %s156
      %p158 = scmp.lt.s32.totalorder %s14, 7
      %s159 = scalar_select %p158, %s14, 7
      %s160 = smul.addr %s159, 8
      %s161 = scalar_lea.vmem %s0, %s160
      %p162 = scmp.lt.s32.totalorder %s14, 7
      %s163 = scalar_select %p162, %s14, 7
      %s164 = smul.addr %s163, 8
      %s165 = scalar_lea.vmem %s3, %s164
      %v166 = vld [vmem:[%s161] sm:$0xff]
      %v167 = vld [vmem:[%s1] sm:$0xff]
      %v168 = vld [vmem:[%s1 + $0x8] sm:$0xff]
      %v169 = vld [vmem:[%s1 + $0x10] sm:$0xff]
      %v170 = vld [vmem:[%s1 + $0x18] sm:$0xff]
      %v171 = vld [vmem:[%s2] sm:$0x1]
      %v173 = vperm.slane %v171, 0
      %vm175 = vcmask 261120
      %v177 = vsel %vm175, %v166, 0
      %179 = vmatpush.msra.mxu0 0.0
      %180 = vmatpush.msra.mxu0 0.0
      %181 = vmatpush.msra.mxu0 0.0
      %182 = vmatpush.msra.mxu0 0.0
      %183 = vmatpush.msra.mxu0 0.0
      %184 = vmatpush.msra.mxu0 0.0
      %185 = vmatpush.msra.mxu0 0.0
      %186 = vmatpush.msra.mxu0 0.0
      %187 = vmatpush.msra.mxu0 0.0
      %188 = vmatpush.msra.mxu0 0.0
      %189 = vmatpush.msra.mxu0 0.0
      %190 = vmatpush.msra.mxu0 0.0
      %191 = vmatpush.msra.mxu0 %v170
      %192 = vmatpush.msra.mxu0 %v169
      %193 = vmatpush.msra.mxu0 %v168
      %194 = vmatpush.msra.mxu0 %v167
      %195 = vmatmul.f32.gmra.mxu0 %v177
      %v196 = vpop.f32.mrf.mxu0
      %v197 = vadd.f32 %v173, %v196
      %198 = vdwg.mxu0
      %vm199 = vcmask 64512
      %200 = vst.msk [vmem:[%s165] sm:$0xff] %vm199, %v197
      %p201 = scmp.lt.s32.totalorder %s14, 7
      %s202 = scalar_select %p201, %s14, 7
      %s203 = smul.addr %s202, 8
      %s204 = scalar_lea.vmem %s3, %s203
      // Predicated region
      $region33: #{_forward.1} parent=31 // pred_check
        %p205 = pneg %p100
      $region34: #{_forward.1} parent=31 // pred_check_branch
        %207 = sbr.rel (%p205) target = $region36
      $region35: #{_forward.1} parent=31 // pred_region
        _
      $region36: #{_forward.1} parent=31 // pred_fallthru
        _
    $region32: #{_forward.1} parent=5 // pred_fallthru
      _
    %p208 = scmp.le.s32.totalorder 2, %s9
    // Predicated region
    $region37: #{_forward.1} parent=5 // pred_check
      %p209 = pneg %p208
    $region38: #{_forward.1} parent=5 // pred_check_branch
      %211 = sbr.rel (%p209) target = $region40
    $region39: #{_forward.1} parent=5 // pred_region
      %s212 = ssub.s32 %s9, 2
      // Predicated region
      $region41: #{_forward.1} parent=39 // pred_check
        %p213 = pneg %p106
      $region42: #{_forward.1} parent=39 // pred_check_branch
        %215 = sbr.rel (%p213) target = $region44
      $region43: #{_forward.1} parent=39 // pred_region
        %p216 = scmp.lt.s32.totalorder %s15, 7
        %s217 = scalar_select %p216, %s15, 7
        %s218 = smul.addr %s217, 8
        %s219 = scalar_lea.vmem %s3, %s218
      $region44: #{_forward.1} parent=39 // pred_fallthru
        _
    $region40: #{_forward.1} parent=5 // pred_fallthru
      _
  $region6: #{_forward.1} parent=0 // loop_footer
    %s13 = sadd.s32 1, %s9
  $region7: #{_forward.1} parent=0 // loop_footer_branch
    %8 = sbr.rel target = $region3
  $region8: #{_forward.1} parent=0 // loop_exit
    _

</llo_original>
